<compile_context>
chip_gen: v6e
topology: v6e:2x2x1
jax: 0.10.0
libtpu: 0.0.40
codegen_flags: <defaults>
</compile_context>

<pallas_src>
import jax
import jax.numpy as jnp
from jax.experimental import pallas as pl
from jax.experimental.pallas import tpu as pltpu


def _round_up(n, m):
    return ((n + m - 1) // m) * m


def fm_kernel(x_ref, tab_ref, w_ref, b_ref, out_ref):
    """One batch tile of the FM forward pass (examples on the lane axis).

    x_ref   : (F, TB)     int32   field indices for TB examples        (VMEM)
    tab_ref : (D+1, V)    float32 rows 0:D = E^T,  row D = proj-0.5||E||^2 (VMEM, resident)
    w_ref   : (1, 1)      float32 fc weight                            (SMEM)
    b_ref   : (1, 1)      float32 fc bias                              (SMEM)
    out_ref : (1, TB)     float32 sigmoid(logit), lane-dense row
    """
    F, TB = x_ref.shape
    Dp1, V = tab_ref.shape
    D = Dp1 - 1

    # In-kernel gather + field-sum fused as a one-hot "counts" matmul:
    #   counts[v, b] = #{f : x[f, b] == v}
    iota_v = jax.lax.broadcasted_iota(jnp.int32, (V, TB), 0)
    counts = (iota_v == x_ref[0:1, :]).astype(jnp.float32)
    for f in range(1, F):                                   # F is small & static
        counts = counts + (iota_v == x_ref[f:f + 1, :]).astype(jnp.float32)

    # Single MXU pass does gather + field-reduce + linear term:
    #   rows 0:D -> s^T = (sum_f v_f)^T
    #   row  D   -> proj_term - 0.5 * sum_f ||v_f||^2
    sl = jnp.dot(tab_ref[...], counts, preferred_element_type=jnp.float32)  # (D+1, TB)
    s_t = sl[:D, :]                                                         # (D, TB)
    lin = sl[D:D + 1, :]                                                    # (1, TB)

    # 0.5 * ||sum_f v_f||^2 : sublane reduce over D.
    ssq = jnp.sum(s_t * s_t, axis=0, keepdims=True)                         # (1, TB)

    logit = (lin + 0.5 * ssq) * w_ref[0, 0] + b_ref[0, 0]                   # (1, TB)
    out_ref[...] = jax.nn.sigmoid(logit)


def _choose_tile(B, tb_max=1024):
    """Lane-dense batch tile: multiple of 128, <= tb_max, prefer >= 2 tiles (v7x)."""
    b128 = _round_up(B, 128)
    tb = min(tb_max, b128)
    b_pad = _round_up(B, tb)
    # v7x has 2 TensorCores: split into >=2 parallel tiles when tiles stay >=128.
    if b_pad // tb < 2 and tb >= 256:
        tb = _round_up(tb // 2, 128)
        b_pad = _round_up(B, tb)
    return tb, b_pad


def fm_forward(x, emb_table, proj_table, fc_w, fc_b):
    """x: (B, F) int32 indices (already offset into the flattened vocab)."""
    x = jnp.asarray(x, jnp.int32)
    B, F = x.shape
    V, D = emb_table.shape

    TB, B_pad = _choose_tile(B)
    num_tiles = B_pad // TB

    # Layout plumbing only (tables are tiny; examples moved onto the lane axis).
    x_t = jnp.zeros((F, B_pad), jnp.int32).at[:, :B].set(x.T)   # pad w/ valid id 0
    emb_t = emb_table.astype(jnp.float32).T                      # (D, V)
    c_row = (proj_table.astype(jnp.float32).T                    # (1, V)
             - 0.5 * jnp.sum(emb_t * emb_t, axis=0, keepdims=True))
    tab = jnp.concatenate([emb_t, c_row], axis=0)                # (D+1, V)
    w = fc_w.reshape(1, 1).astype(jnp.float32)
    b = fc_b.reshape(1, 1).astype(jnp.float32)

    out = pl.pallas_call(
        fm_kernel,
        out_shape=jax.ShapeDtypeStruct((num_tiles, TB), jnp.float32),
        grid_spec=pltpu.PrefetchScalarGridSpec(
            num_scalar_prefetch=0,
            grid=(num_tiles,),
            in_specs=[
                pl.BlockSpec((F, TB), lambda i: (0, i)),          # index tile
                pl.BlockSpec((D + 1, V), lambda i: (0, 0)),       # table (resident, full dims)
                pl.BlockSpec((1, 1), lambda i: (0, 0),
                             memory_space=pltpu.MemorySpace.SMEM),  # fc weight
                pl.BlockSpec((1, 1), lambda i: (0, 0),
                             memory_space=pltpu.MemorySpace.SMEM),  # fc bias
            ],
            out_specs=pl.BlockSpec((1, TB), lambda i: (i, 0)),
        ),
        compiler_params=pltpu.CompilerParams(
            dimension_semantics=("parallel",),   # shard batch tiles across v7x's 2 TCs
            vmem_limit_bytes=32 * 1024 * 1024,
        ),
    )(x_t, tab, w, b)

    return out.reshape(-1)[:B]                   # (B,) == sigmoid(logit)


def fm_reference(x, emb_table, proj_table, fc_w, fc_b):
    v = jnp.take(emb_table, x, axis=0)                                  # (B, F, D)
    interaction = 0.5 * jnp.sum(
        jnp.sum(v, axis=1) ** 2 - jnp.sum(v ** 2, axis=1), axis=-1, keepdims=True)
    proj = jnp.sum(jnp.take(proj_table, x, axis=0), axis=1)             # (B, 1)
    logit = (proj + interaction) * fc_w.reshape(()) + fc_b.reshape(())
    return jax.nn.sigmoid(logit.reshape(-1))


if __name__ == "__main__":
    # Module config: feat_dims sum to the vocab size, embedding_dims = D.
    feat_dims = (3, 4, 5, 4)              # 4 fields, 16 total feature ids
    num_inputs = int(sum(feat_dims))      # 16
    D = 32                                # embedding_dims
    F = len(feat_dims)                    # fields per example

    key = jax.random.PRNGKey(0)
    k_emb, k_proj, k_w, k_x1, k_x2 = jax.random.split(key, 5)

    # xavier-normal-ish init (nn.init.xavier_normal_ semantics).
    emb_std = (2.0 / (num_inputs + D)) ** 0.5
    proj_std = (2.0 / (num_inputs + 1)) ** 0.5
    fc_std = (2.0 / (1 + 1)) ** 0.5
    emb_table = emb_std * jax.random.normal(k_emb, (num_inputs, D), jnp.float32)
    proj_table = proj_std * jax.random.normal(k_proj, (num_inputs, 1), jnp.float32)
    fc_w = fc_std * jax.random.normal(k_w, (1, 1), jnp.float32)
    fc_b = jnp.zeros((1,), jnp.float32)   # TODO(synk): torch Linear uses uniform bias init

    # Case 1: small batch (single 128-wide lane-dense tile).
    B1 = 8
    x1 = jax.random.randint(k_x1, (B1, F), 0, num_inputs, dtype=jnp.int32)
    out1 = jax.block_until_ready(fm_forward(x1, emb_table, proj_table, fc_w, fc_b))
    ref1 = fm_reference(x1, emb_table, proj_table, fc_w, fc_b)
    assert out1.shape == (B1,)
    assert jnp.allclose(out1, ref1, atol=1e-4, rtol=1e-4)

    # Case 2: multi-tile batch grid (TB=1024, 2 parallel tiles) with padded tail.
    B2 = 1200
    x2 = jax.random.randint(k_x2, (B2, F), 0, num_inputs, dtype=jnp.int32)
    out2 = jax.block_until_ready(fm_forward(x2, emb_table, proj_table, fc_w, fc_b))
    ref2 = fm_reference(x2, emb_table, proj_table, fc_w, fc_b)
    assert out2.shape == (B2,)
    assert jnp.allclose(out2, ref2, atol=1e-4, rtol=1e-4)

    print("KERNEL_OK")
</pallas_src>

<mosaic_0001>
module attributes {stable_mosaic.version = 11 : i64} {
  func.func @fm_kernel(%arg0: i32, %arg1: memref<4x128xi32, #tpu.memory_space<vmem>>, %arg2: memref<33x16xf32, #tpu.memory_space<vmem>>, %arg3: memref<1x1xf32, #tpu.memory_space<smem>>, %arg4: memref<1x1xf32, #tpu.memory_space<smem>>, %arg5: memref<1x128xf32, #tpu.memory_space<vmem>>) attributes {dimension_semantics = [#tpu.dimension_semantics<parallel>], iteration_bounds = array<i64: 1>, scalar_prefetch = 0 : i64, scratch_operands = 0 : i64, tpu.core_type = #tpu.core_type<tc>, window_params = [{transform_indices = @transform_0, window_bounds = array<i64: 4, 128>}, {pipeline_mode = #tpu.pipeline_mode<synchronous>, transform_indices = @transform_1, window_bounds = array<i64: 33, 16>}, {transform_indices = @transform_2, window_bounds = array<i64: 1, 1>}, {transform_indices = @transform_3, window_bounds = array<i64: 1, 1>}, {transform_indices = @transform_4, window_bounds = array<i64: 1, 128>}]} {
    %0 = tpu.iota {dimensions = array<i32: 0>} : vector<16x128xi32>
    %c0 = arith.constant 0 : index
    %c0_0 = arith.constant 0 : index
    %1 = vector.load %arg1[%c0, %c0_0] : memref<4x128xi32, #tpu.memory_space<vmem>>, vector<1x128xi32>
    %2 = vector.broadcast %1 : vector<1x128xi32> to vector<16x128xi32>
    %3 = arith.cmpi eq, %0, %2 : vector<16x128xi32>
    %4 = arith.extui %3 : vector<16x128xi1> to vector<16x128xi32>
    %5 = arith.sitofp %4 : vector<16x128xi32> to vector<16x128xf32>
    %c1 = arith.constant 1 : index
    %c0_1 = arith.constant 0 : index
    %6 = vector.load %arg1[%c1, %c0_1] : memref<4x128xi32, #tpu.memory_space<vmem>>, vector<1x128xi32>
    %7 = vector.broadcast %6 : vector<1x128xi32> to vector<16x128xi32>
    %8 = arith.cmpi eq, %0, %7 : vector<16x128xi32>
    %9 = arith.extui %8 : vector<16x128xi1> to vector<16x128xi32>
    %10 = arith.sitofp %9 : vector<16x128xi32> to vector<16x128xf32>
    %11 = arith.addf %5, %10 : vector<16x128xf32>
    %c2 = arith.constant 2 : index
    %c0_2 = arith.constant 0 : index
    %12 = vector.load %arg1[%c2, %c0_2] : memref<4x128xi32, #tpu.memory_space<vmem>>, vector<1x128xi32>
    %13 = vector.broadcast %12 : vector<1x128xi32> to vector<16x128xi32>
    %14 = arith.cmpi eq, %0, %13 : vector<16x128xi32>
    %15 = arith.extui %14 : vector<16x128xi1> to vector<16x128xi32>
    %16 = arith.sitofp %15 : vector<16x128xi32> to vector<16x128xf32>
    %17 = arith.addf %11, %16 : vector<16x128xf32>
    %c3 = arith.constant 3 : index
    %c0_3 = arith.constant 0 : index
    %18 = vector.load %arg1[%c3, %c0_3] : memref<4x128xi32, #tpu.memory_space<vmem>>, vector<1x128xi32>
    %19 = vector.broadcast %18 : vector<1x128xi32> to vector<16x128xi32>
    %20 = arith.cmpi eq, %0, %19 : vector<16x128xi32>
    %21 = arith.extui %20 : vector<16x128xi1> to vector<16x128xi32>
    %22 = arith.sitofp %21 : vector<16x128xi32> to vector<16x128xf32>
    %23 = arith.addf %17, %22 : vector<16x128xf32>
    %c0_4 = arith.constant 0 : index
    %c0_5 = arith.constant 0 : index
    %24 = vector.load %arg2[%c0_4, %c0_5] : memref<33x16xf32, #tpu.memory_space<vmem>>, vector<33x16xf32>
    %cst = arith.constant dense<0.000000e+00> : vector<33x128xf32>
    %25 = tpu.matmul %24, %23, %cst {dimension_numbers = #tpu.dot_dimension_numbers<[1], [0], [0], [1], [0, 0, 1, 1], [], []>} : vector<33x16xf32>, vector<16x128xf32>, vector<33x128xf32> -> vector<33x128xf32>
    %26 = vector.extract_strided_slice %25 {offsets = [0, 0], sizes = [32, 128], strides = [1, 1]} : vector<33x128xf32> to vector<32x128xf32>
    %27 = vector.extract_strided_slice %25 {offsets = [32, 0], sizes = [1, 128], strides = [1, 1]} : vector<33x128xf32> to vector<1x128xf32>
    %28 = arith.mulf %26, %26 : vector<32x128xf32>
    %cst_6 = arith.constant dense<0.000000e+00> : vector<128xf32>
    %29 = vector.multi_reduction <add>, %28, %cst_6 [0] : vector<32x128xf32> to vector<128xf32>
    %30 = vector.shape_cast %29 : vector<128xf32> to vector<1x128xf32>
    %cst_7 = arith.constant 5.000000e-01 : f32
    %31 = vector.broadcast %cst_7 : f32 to vector<1x128xf32>
    %32 = arith.mulf %31, %30 : vector<1x128xf32>
    %33 = arith.addf %27, %32 : vector<1x128xf32>
    %c0_8 = arith.constant 0 : index
    %c0_9 = arith.constant 0 : index
    %34 = memref.load %arg3[%c0_8, %c0_9] : memref<1x1xf32, #tpu.memory_space<smem>>
    %35 = vector.broadcast %34 : f32 to vector<1x128xf32>
    %36 = arith.mulf %33, %35 : vector<1x128xf32>
    %c0_10 = arith.constant 0 : index
    %c0_11 = arith.constant 0 : index
    %37 = memref.load %arg4[%c0_10, %c0_11] : memref<1x1xf32, #tpu.memory_space<smem>>
    %38 = vector.broadcast %37 : f32 to vector<1x128xf32>
    %39 = arith.addf %36, %38 : vector<1x128xf32>
    %40 = arith.negf %39 : vector<1x128xf32>
    %41 = math.exp %40 : vector<1x128xf32>
    %cst_12 = arith.constant 1.000000e+00 : f32
    %42 = vector.broadcast %cst_12 : f32 to vector<1x128xf32>
    %43 = arith.addf %42, %41 : vector<1x128xf32>
    %44 = arith.divf %42, %43 : vector<1x128xf32>
    %c0_13 = arith.constant 0 : index
    %c0_14 = arith.constant 0 : index
    %45 = vector.load %arg5[%c0_13, %c0_14] : memref<1x128xf32, #tpu.memory_space<vmem>>, vector<1x128xf32>
    tpu.vector_store %arg5[%c0_13, %c0_14], %44 {strides = array<i32>} : memref<1x128xf32, #tpu.memory_space<vmem>>, vector<1x128xf32>,
    return
  }
  func.func @transform_0(%arg0: i32) -> (i32, i32) {
    %c0_i32 = arith.constant 0 : i32
    %c0_i32_0 = arith.constant 0 : i32
    return %c0_i32, %arg0 : i32, i32
  }
  func.func @transform_1(%arg0: i32) -> (i32, i32) {
    %c0_i32 = arith.constant 0 : i32
    %c0_i32_0 = arith.constant 0 : i32
    %c0_i32_1 = arith.constant 0 : i32
    return %c0_i32, %c0_i32_0 : i32, i32
  }
  func.func @transform_2(%arg0: i32) -> (i32, i32) {
    %c0_i32 = arith.constant 0 : i32
    %c0_i32_0 = arith.constant 0 : i32
    %c0_i32_1 = arith.constant 0 : i32
    return %c0_i32, %c0_i32_0 : i32, i32
  }
  func.func @transform_3(%arg0: i32) -> (i32, i32) {
    %c0_i32 = arith.constant 0 : i32
    %c0_i32_0 = arith.constant 0 : i32
    %c0_i32_1 = arith.constant 0 : i32
    return %c0_i32, %c0_i32_0 : i32, i32
  }
  func.func @transform_4(%arg0: i32) -> (i32, i32) {
    %c0_i32 = arith.constant 0 : i32
    %c0_i32_0 = arith.constant 0 : i32
    return %arg0, %c0_i32 : i32, i32
  }
}

</mosaic_0001>

<llo_original>
// kernel: tpu_custom_call.1
$region0: #{tpu_custom_call.1}
  #allocation0 [shape = 'u32[]', space=smem, size = 0x4, offset = 0x4, fixed_abs, tag = 'smem constant byte address 0x4 - core index']
  #allocation1 [shape = 'u32[144,128]{1,0:T(1,128)}', space=vmem, size = 0x12000, scoped, tag = 'internal scratch']
  #allocation2 [shape = 'f32[1,1]{1,0:T(1,128)S(6)}', space=smem, size = 0x200, scoped, tag = 'scoped memory for tpu_custom_call.1']
  #allocation3 [shape = 'f32[1,1]{1,0:T(1,128)S(6)}', space=smem, size = 0x200, scoped, tag = 'scoped memory for tpu_custom_call.1']
  %s0 = inlined_call_operand.vmem [shape: s32[4,128], index: 0, kind: input, shape index: {}]
  %s1 = inlined_call_operand.vmem [shape: f32[33,16], index: 1, kind: input, shape index: {}]
  %s2 = inlined_call_operand.<no memory space> [shape: f32[1,1], index: 2, kind: input, shape index: {}]
  %s3 = inlined_call_operand.<no memory space> [shape: f32[1,1], index: 3, kind: input, shape index: {}]
  %s4 = inlined_call_operand.hbm [shape: f32[1,128], index: 4, kind: output, shape index: {}]
  %s5 = sld [smem:[#allocation0]]
  $region26: #{tpu_custom_call.1} parent=0
    _
  %s7 = ssub.s32 1, %s5
  %s8 = scalar_select 0, %s7, %s5
  %9 = sst [smem:[#allocation2]] %s2
  %10 = sst [smem:[#allocation3]] %s3
  $region1: #{tpu_custom_call.1} parent=0
    #allocation4 [shape = 'u8[512]{0}', space=vmem, size = 0x400, scoped, tag = 'output window, operand 0, single buffered']
    #allocation5 [shape = 's32[1]{0}', space=sflag, size = 0x4, scoped, tag = 'scoped memory for tpu_custom_call.1']
    %11 = vsyncpa [#allocation5], 0
    // Predicated region
    $region2: #{tpu_custom_call.1} parent=1 // pred_check
      _
    $region3: #{tpu_custom_call.1} parent=1 // pred_check_branch
      %13 = sbr.rel (0) target = $region5
    $region4: #{tpu_custom_call.1} parent=1 // pred_region
      _
    $region5: #{tpu_custom_call.1} parent=1 // pred_fallthru
      _
    // Predicated region
    $region6: #{tpu_custom_call.1} parent=1 // pred_check
      _
    $region7: #{tpu_custom_call.1} parent=1 // pred_check_branch
      %15 = sbr.rel (0) target = $region9
    $region8: #{tpu_custom_call.1} parent=1 // pred_region
      _
    $region9: #{tpu_custom_call.1} parent=1 // pred_fallthru
      _
    // Predicated region
    $region10: #{tpu_custom_call.1} parent=1 // pred_check
      _
    $region11: #{tpu_custom_call.1} parent=1 // pred_check_branch
      %17 = sbr.rel (0) target = $region13
    $region12: #{tpu_custom_call.1} parent=1 // pred_region
      _
    $region13: #{tpu_custom_call.1} parent=1 // pred_fallthru
      _
    // Predicated region
    $region14: #{tpu_custom_call.1} parent=1 // pred_check
      _
    $region15: #{tpu_custom_call.1} parent=1 // pred_check_branch
      %19 = sbr.rel (0) target = $region17
    $region16: #{tpu_custom_call.1} parent=1 // pred_region
      _
    $region17: #{tpu_custom_call.1} parent=1 // pred_fallthru
      _
    %v20 = vlaneseq
    %v21 = vshrl.u32 %v20, 7
    %v22 = vadd.s32 %v21, 8
    %v23 = vld [vmem:[%s0] sm:$0x1]
    %v24 = vlaneseq
    %v25 = vshrl.u32 %v24, 7
    %v26 = vsub.s32 0, %v25
    %v27 = vrot.slane %v23, %v26
    %vm28 = vcmp.eq.s32.totalorder %v21, %v27
    %vm29 = vcmp.eq.s32.totalorder %v22, %v27
    %v30 = vsel %vm28, 1, 0
    %v31 = vsel %vm29, 1, 0
    %v32 = vcvt.s32.f32 %v30
    %v33 = vcvt.s32.f32 %v31
    %v34 = vld [vmem:[%s0 + $0x1] sm:$0x1]
    %v35 = vlaneseq
    %v36 = vshrl.u32 %v35, 7
    %v37 = vsub.s32 0, %v36
    %v38 = vrot.slane %v34, %v37
    %vm39 = vcmp.eq.s32.totalorder %v21, %v38
    %vm40 = vcmp.eq.s32.totalorder %v22, %v38
    %v41 = vsel %vm39, 1, 0
    %v42 = vsel %vm40, 1, 0
    %v43 = vcvt.s32.f32 %v41
    %v44 = vcvt.s32.f32 %v42
    %v45 = vadd.f32 %v32, %v43
    %v46 = vadd.f32 %v33, %v44
    %v47 = vld [vmem:[%s0 + $0x2] sm:$0x1]
    %v48 = vlaneseq
    %v49 = vshrl.u32 %v48, 7
    %v50 = vsub.s32 0, %v49
    %v51 = vrot.slane %v47, %v50
    %vm52 = vcmp.eq.s32.totalorder %v21, %v51
    %vm53 = vcmp.eq.s32.totalorder %v22, %v51
    %v54 = vsel %vm52, 1, 0
    %v55 = vsel %vm53, 1, 0
    %v56 = vcvt.s32.f32 %v54
    %v57 = vcvt.s32.f32 %v55
    %v58 = vadd.f32 %v45, %v56
    %v59 = vadd.f32 %v46, %v57
    %v60 = vld [vmem:[%s0 + $0x3] sm:$0x1]
    %v61 = vlaneseq
    %v62 = vshrl.u32 %v61, 7
    %v63 = vsub.s32 0, %v62
    %v64 = vrot.slane %v60, %v63
    %vm65 = vcmp.eq.s32.totalorder %v21, %v64
    %vm66 = vcmp.eq.s32.totalorder %v22, %v64
    %v67 = vsel %vm65, 1, 0
    %v68 = vsel %vm66, 1, 0
    %v69 = vcvt.s32.f32 %v67
    %v70 = vcvt.s32.f32 %v68
    %v71 = vadd.f32 %v58, %v69
    %v72 = vadd.f32 %v59, %v70
    %v73 = vld [vmem:[%s1] sm:$0xff]
    %v74 = vld [vmem:[%s1 + $0x8] sm:$0xff]
    %v75 = vld [vmem:[%s1 + $0x10] sm:$0xff]
    %v76 = vld [vmem:[%s1 + $0x18] sm:$0xff]
    %v77 = vld [vmem:[%s1 + $0x20] sm:$0x1]
    %vm78 = vcmask 130048
    %v80 = vsel %vm78, %v73, 0
    %v83 = vsel %vm78, %v74, 0
    %v86 = vsel %vm78, %v75, 0
    %v89 = vsel %vm78, %v76, 0
    %v92 = vsel %vm78, %v77, 0
    %94 = vmatprep.subr.mxu0 0.0
    %95 = vmatpush1.msra.mxu0 0.0
    %96 = vmatprep.subr.mxu0 0.0
    %97 = vmatpush1.msra.mxu0 0.0
    %98 = vmatprep.subr.mxu0 0.0
    %99 = vmatpush1.msra.mxu0 0.0
    %100 = vmatprep.subr.mxu0 0.0
    %101 = vmatpush1.msra.mxu0 0.0
    %102 = vmatprep.subr.mxu0 0.0
    %103 = vmatpush1.msra.mxu0 0.0
    %104 = vmatprep.subr.mxu0 0.0
    %105 = vmatpush1.msra.mxu0 0.0
    %106 = vmatprep.subr.mxu0 0.0
    %107 = vmatpush1.msra.mxu0 0.0
    %108 = vmatprep.subr.mxu0 0.0
    %109 = vmatpush1.msra.mxu0 0.0
    %110 = vmatprep.subr.mxu0 0.0
    %111 = vmatpush1.msra.mxu0 0.0
    %112 = vmatprep.subr.mxu0 0.0
    %113 = vmatpush1.msra.mxu0 0.0
    %114 = vmatprep.subr.mxu0 0.0
    %115 = vmatpush1.msra.mxu0 0.0
    %116 = vmatprep.subr.mxu0 0.0
    %117 = vmatpush1.msra.mxu0 0.0
    %118 = vmatprep.subr.mxu0 0.0
    %119 = vmatpush1.msra.mxu0 0.0
    %120 = vmatprep.subr.mxu0 0.0
    %121 = vmatpush1.msra.mxu0 0.0
    %122 = vmatprep.subr.mxu0 0.0
    %123 = vmatpush1.msra.mxu0 %v72
    %124 = vmatprep.subr.mxu0 0.0
    %125 = vmatpush1.msra.mxu0 %v71
    %126 = vmatprep.subr.mxu0 0.0
    %127 = vmatpush2.msra.mxu0 0.0
    %128 = vmatprep.subr.mxu0 0.0
    %129 = vmatpush2.msra.mxu0 0.0
    %130 = vmatprep.subr.mxu0 0.0
    %131 = vmatpush2.msra.mxu0 0.0
    %132 = vmatprep.subr.mxu0 0.0
    %133 = vmatpush2.msra.mxu0 0.0
    %134 = vmatprep.subr.mxu0 0.0
    %135 = vmatpush2.msra.mxu0 0.0
    %136 = vmatprep.subr.mxu0 0.0
    %137 = vmatpush2.msra.mxu0 0.0
    %138 = vmatprep.subr.mxu0 0.0
    %139 = vmatpush2.msra.mxu0 0.0
    %140 = vmatprep.subr.mxu0 0.0
    %141 = vmatpush2.msra.mxu0 0.0
    %142 = vmatprep.subr.mxu0 0.0
    %143 = vmatpush2.msra.mxu0 0.0
    %144 = vmatprep.subr.mxu0 0.0
    %145 = vmatpush2.msra.mxu0 0.0
    %146 = vmatprep.subr.mxu0 0.0
    %147 = vmatpush2.msra.mxu0 0.0
    %148 = vmatprep.subr.mxu0 0.0
    %149 = vmatpush2.msra.mxu0 0.0
    %150 = vmatprep.subr.mxu0 0.0
    %151 = vmatpush2.msra.mxu0 0.0
    %152 = vmatprep.subr.mxu0 0.0
    %153 = vmatpush2.msra.mxu0 0.0
    %154 = vmatprep.subr.mxu0 0.0
    %155 = vmatpush2.msra.mxu0 0.0
    %156 = vmatprep.subr.mxu0 0.0
    %157 = vmatpush2.msra.mxu0 0.0
    %158 = vmatprep.mubr.f32.mxu0 0.0
    %159 = vmatmul.mubr.f32.gmra.mxu0 %v80
    %v160 = vpop.f32.mrf.mxu0
    %v161 = vadd.f32 0.0, %v160
    %v162 = vpop.f32.mrf.mxu0
    %163 = vmatprep.mubr.f32.mxu0 0.0
    %164 = vmatmul.mubr.f32.gmra.mxu0 %v83
    %v165 = vpop.f32.mrf.mxu0
    %v166 = vadd.f32 0.0, %v165
    %v167 = vpop.f32.mrf.mxu0
    %168 = vmatprep.mubr.f32.mxu0 0.0
    %169 = vmatmul.mubr.f32.gmra.mxu0 %v86
    %v170 = vpop.f32.mrf.mxu0
    %v171 = vadd.f32 0.0, %v170
    %v172 = vpop.f32.mrf.mxu0
    %173 = vmatprep.mubr.f32.mxu0 0.0
    %174 = vmatmul.mubr.f32.gmra.mxu0 %v89
    %v175 = vpop.f32.mrf.mxu0
    %v176 = vadd.f32 0.0, %v175
    %v177 = vpop.f32.mrf.mxu0
    %178 = vmatprep.mubr.f32.mxu0 0.0
    %179 = vmatmul.mubr.f32.gmra.mxu0 %v92
    %v180 = vpop.f32.mrf.mxu0
    %v181 = vadd.f32 0.0, %v180
    %v182 = vpop.f32.mrf.mxu0
    %183 = vdwg.mxu0
    %v184 = vmul.f32 %v161, %v161
    %v185 = vmul.f32 %v166, %v166
    %v186 = vmul.f32 %v171, %v171
    %v187 = vmul.f32 %v176, %v176
    %v188 = vadd.f32 %v184, %v185
    %v189 = vadd.f32 %v188, %v186
    %v190 = vadd.f32 %v189, %v187
    %v191 = vrot.slane %v190, 4
    %v192 = vadd.f32 %v190, %v191
    %v193 = vrot.slane %v192, 2
    %v194 = vadd.f32 %v192, %v193
    %v195 = vrot.slane %v194, 1
    %v196 = vadd.f32 %v194, %v195
    %v197 = vmul.f32 %v196, 0.5
    %v198 = vadd.f32 %v181, %v197
    %s199 = sld [smem:[#allocation2]]
    %v200 = vstv %s199
    %v201 = vmul.f32 %v198, %v200
    %s202 = sld [smem:[#allocation3]]
    %v203 = vstv %s202
    %v204 = vadd.f32 %v201, %v203
    %v205 = vxor.u32 %v204, 2147483648
    %v206 = vmul.f32 %v205, 1.442695
    %v207 = vpow.pop %v206
    %v208 = vadd.f32 %v207, 1.0
    %v209 = vrcp.pop %v208
    %v210 = vmul.f32 1.0, %v209
    %211 = vst [vmem:[#allocation4] sm:$0x1] %v210
    // Predicated region
    $region18: #{tpu_custom_call.1} parent=1 // pred_check
      _
    $region19: #{tpu_custom_call.1} parent=1 // pred_check_branch
      %213 = sbr.rel (0) target = $region21
    $region20: #{tpu_custom_call.1} parent=1 // pred_region
      %s215 = ssub.s32 16, 16
      %216 = vsyncadd [#allocation5], %s215
      %s218 = sshll.u32 [#allocation4], 4
      %s219 = int_to_ptr.vmem [resolvable:$true] %s218
      %221 = dma.vmem_to_hbm [thread:$0]  %s219, 16, %s4, [#allocation5]
    $region21: #{tpu_custom_call.1} parent=1 // pred_fallthru
      _
    // Predicated region
    $region22: #{tpu_custom_call.1} parent=1 // pred_check
      _
    $region23: #{tpu_custom_call.1} parent=1 // pred_check_branch
      %223 = sbr.rel (0) target = $region25
    $region24: #{tpu_custom_call.1} parent=1 // pred_region
      %224 = dma.done [#allocation5], 16
    $region25: #{tpu_custom_call.1} parent=1 // pred_fallthru
      _
    %225 = vsyncpa [#allocation5], 1

</llo_original>
